<compile_context>
chip_gen: v6e
topology: v6e:2x2x1
jax: 0.10.0
libtpu: 0.0.40
codegen_flags: <defaults>
</compile_context>

<pallas_src>
import math

import jax
import jax.numpy as jnp
from jax.experimental import pallas as pl
from jax.experimental.pallas import tpu as pltpu

# Padded layer widths (multiples of 128).
_D1, _D2, _D3, _D4 = 256, 128, 128, 128       # 150, 75, 50, 1 -> padded
_BIAS_OFFS = (0, _D1, _D1 + _D2, _D1 + _D2 + _D3, _D1 + _D2 + _D3 + _D4)


def critic_kernel(x_ref, w1_ref, w2_ref, w3_ref, w4_ref, b_ref, o_ref):
    """One batch tile: fused 4-layer MLP.

    Matmul operands in the weights' dtype (bf16 by default); accumulation,
    bias add and ReLU in f32. fc4 is a VPU multiply + lane reduction.
    """
    cdtype = w1_ref.dtype

    # Static, 128-aligned lane slices of the packed bias row (f32).
    b1 = b_ref[:, _BIAS_OFFS[0]:_BIAS_OFFS[1]]    # [1, 256]
    b2 = b_ref[:, _BIAS_OFFS[1]:_BIAS_OFFS[2]]    # [1, 128]
    b3 = b_ref[:, _BIAS_OFFS[2]:_BIAS_OFFS[3]]    # [1, 128]
    b4 = b_ref[:, _BIAS_OFFS[3]:_BIAS_OFFS[4]]    # [1, 128] (b4 in lane 0, rest 0)

    # fc1 on the merged [TB, 8] (state|action) tile.
    h = jnp.dot(x_ref[...], w1_ref[...], preferred_element_type=jnp.float32)
    h = jnp.maximum(h + b1, 0.0)                                  # [TB, 256] f32

    h = jnp.dot(h.astype(cdtype), w2_ref[...], preferred_element_type=jnp.float32)
    h = jnp.maximum(h + b2, 0.0)                                  # [TB, 128] f32

    h = jnp.dot(h.astype(cdtype), w3_ref[...], preferred_element_type=jnp.float32)
    h = jnp.maximum(h + b3, 0.0)                                  # [TB, 128] f32

    # fc4: 1-wide output -> no MXU pass, no 128-wide output slab.
    # Padded lanes of h and w4 are zero, and b4 lives only in lane 0, so the
    # 128-lane sum equals h[:, :50] @ w4 + b4 exactly.
    w4row = w4_ref[...].astype(jnp.float32)                       # [1, 128]
    q = jnp.sum(h * w4row + b4, axis=-1, keepdims=True)           # [TB, 1] f32
    o_ref[...] = q.astype(o_ref.dtype)


def _round_up(x, m):
    return ((x + m - 1) // m) * m


def _pad_to(a, shape):
    return jnp.pad(a, [(0, t - s) for s, t in zip(a.shape, shape)])


def critic_forward(state, action, kernel_params, *, block_batch=1024):
    """Pallas wrapper. `kernel_params` comes from pack_params()."""
    w1p, w2p, w3p, w4row, b_packed = kernel_params
    cdtype = w1p.dtype
    Kp = w1p.shape[0]                       # lane-padded fc1 input width (>= S+A)

    B = state.shape[0]

    # Merged (state|action) input, cast to the matmul operand dtype, padded to
    # Kp lanes -> one narrow DMA stream per tile instead of two.
    x = jnp.concatenate([state, action], axis=1).astype(cdtype)

    # Batch tile: multiple of 16 (bf16-native (16,128) tiling), big enough to
    # amortize per-step overhead, but capped at ceil(B/2) for multi-tile
    # batches so the "parallel" axis has >= 2 steps (v7x megacore sharding).
    B16 = _round_up(B, 16)
    tb = min(_round_up(block_batch, 16), B16)
    if B16 > 16:
        tb = min(tb, _round_up(pl.cdiv(B16, 2), 16))
    Bp = _round_up(B, tb)
    grid = (Bp // tb,)

    x_p = _pad_to(x, (Bp, Kp))

    def resident(a):  # VMEM-resident operand: constant block index across the grid
        return pl.BlockSpec(a.shape, lambda i, _nd=a.ndim: (0,) * _nd)

    out = pl.pallas_call(
        critic_kernel,
        out_shape=jax.ShapeDtypeStruct((Bp, 1), jnp.float32),
        grid=grid,
        in_specs=[
            pl.BlockSpec((tb, Kp), lambda i: (i, 0)),   # merged input tile
            resident(w1p), resident(w2p), resident(w3p), resident(w4row),
            resident(b_packed),
        ],
        out_specs=pl.BlockSpec((tb, 1), lambda i: (i, 0)),
        compiler_params=pltpu.CompilerParams(
            dimension_semantics=("parallel",)),         # megacore sharding on v7x
    )(x_p, w1p, w2p, w3p, w4row, b_packed)

    # Only batch padding to trim; output is already 1 lane wide.
    return out[:B]


def init_linear(key, fan_in, fan_out):
    """PyTorch nn.Linear default init: U(-1/sqrt(fan_in), 1/sqrt(fan_in))."""
    kw, kb = jax.random.split(key)
    bound = 1.0 / math.sqrt(fan_in)
    # Stored as [in, out] so the kernel does x @ W directly.
    w = jax.random.uniform(kw, (fan_in, fan_out), jnp.float32, -bound, bound)
    b = jax.random.uniform(kb, (1, fan_out), jnp.float32, -bound, bound)
    return w, b


def make_params(key, state_dim, action_dim):
    """Unpadded, f32 parameters (semantically identical to the PyTorch module)."""
    k1, k2, k3, k4 = jax.random.split(key, 4)
    return (init_linear(k1, state_dim + action_dim, 150),
            init_linear(k2, 150, 75),
            init_linear(k3, 75, 50),
            init_linear(k4, 50, 1))


def pack_params(params, compute_dtype=jnp.bfloat16):
    """Zero-pad widths to 128-multiples, pack biases, cast matmul weights.

    bf16 is the default everywhere (v5e/v6e/v7x MXUs are bf16-native); use
    compute_dtype=jnp.float32 for exact matching with the PyTorch module.
    """
    (w1, b1), (w2, b2), (w3, b3), (w4, b4) = params
    k_in = w1.shape[0]                                     # state_dim + action_dim
    kp = max(8, _round_up(k_in, 8))

    w1p = _pad_to(w1, (kp, _D1)).astype(compute_dtype)     # [8, 256]
    w2p = _pad_to(w2, (_D1, _D2)).astype(compute_dtype)    # [256, 128]
    w3p = _pad_to(w3, (_D2, _D3)).astype(compute_dtype)    # [128, 128]
    w4row = _pad_to(w4.T, (1, _D4)).astype(compute_dtype)  # [1, 128]

    b_packed = jnp.concatenate(
        [_pad_to(b1, (1, _D1)), _pad_to(b2, (1, _D2)),
         _pad_to(b3, (1, _D3)), _pad_to(b4, (1, _D4))],
        axis=1).astype(jnp.float32)                        # [1, 640]

    return w1p, w2p, w3p, w4row, b_packed


def reference_forward(state, action, params):
    """Plain-JAX f32 reference for sanity checks."""
    x = jnp.concatenate([state, action], axis=1).astype(jnp.float32)
    (w1, b1), (w2, b2), (w3, b3), (w4, b4) = params
    x = jnp.maximum(x @ w1 + b1, 0.0)
    x = jnp.maximum(x @ w2 + b2, 0.0)
    x = jnp.maximum(x @ w3 + b3, 0.0)
    return x @ w4 + b4


if __name__ == "__main__":
    key = jax.random.PRNGKey(0)
    k_param, k_state, k_action = jax.random.split(key, 3)

    batch, state_dim, action_dim = 8, 4, 2

    params = make_params(k_param, state_dim, action_dim)
    state = jax.random.normal(k_state, (batch, state_dim), jnp.float32)
    action = jax.random.normal(k_action, (batch, action_dim), jnp.float32)

    # ---- f32 matmul operands (exact-ish match to the PyTorch module) ----
    kp_f32 = pack_params(params, jnp.float32)
    q = jax.block_until_ready(critic_forward(state, action, kp_f32))
    q_ref = reference_forward(state, action, params)
    assert q.shape == (batch, 1)
    assert jnp.allclose(q, q_ref, atol=1e-5, rtol=1e-5)

    # ---- bf16 matmul operands (default path on all chips); ragged batch
    #      exercises 16-row tiling, batch-padding and the >=2-step grid ----
    batch2 = 37
    k_s2, k_a2 = jax.random.split(jax.random.PRNGKey(1))
    state2 = jax.random.normal(k_s2, (batch2, state_dim), jnp.float32)
    action2 = jax.random.normal(k_a2, (batch2, action_dim), jnp.float32)
    kp_bf16 = pack_params(params, jnp.bfloat16)
    q2 = jax.block_until_ready(critic_forward(state2, action2, kp_bf16))
    q2_ref = reference_forward(state2, action2, params)
    assert q2.shape == (batch2, 1)
    assert jnp.allclose(q2, q2_ref, atol=1e-1, rtol=1e-1)

    print("KERNEL_OK")
</pallas_src>

<mosaic_0001>
module attributes {stable_mosaic.version = 11 : i64} {
  func.func @critic_kernel(%arg0: i32, %arg1: memref<16x8xf32, #tpu.memory_space<vmem>>, %arg2: memref<8x256xf32, #tpu.memory_space<vmem>>, %arg3: memref<256x128xf32, #tpu.memory_space<vmem>>, %arg4: memref<128x128xf32, #tpu.memory_space<vmem>>, %arg5: memref<1x128xf32, #tpu.memory_space<vmem>>, %arg6: memref<1x640xf32, #tpu.memory_space<vmem>>, %arg7: memref<16x1xf32, #tpu.memory_space<vmem>>) attributes {dimension_semantics = [#tpu.dimension_semantics<parallel>], iteration_bounds = array<i64: 1>, scalar_prefetch = 0 : i64, scratch_operands = 0 : i64, tpu.core_type = #tpu.core_type<tc>, window_params = [{transform_indices = @transform_0, window_bounds = array<i64: 16, 8>}, {pipeline_mode = #tpu.pipeline_mode<synchronous>, transform_indices = @transform_1, window_bounds = array<i64: 8, 256>}, {pipeline_mode = #tpu.pipeline_mode<synchronous>, transform_indices = @transform_2, window_bounds = array<i64: 256, 128>}, {pipeline_mode = #tpu.pipeline_mode<synchronous>, transform_indices = @transform_3, window_bounds = array<i64: 128, 128>}, {pipeline_mode = #tpu.pipeline_mode<synchronous>, transform_indices = @transform_4, window_bounds = array<i64: 1, 128>}, {pipeline_mode = #tpu.pipeline_mode<synchronous>, transform_indices = @transform_5, window_bounds = array<i64: 1, 640>}, {transform_indices = @transform_6, window_bounds = array<i64: 16, 1>}]} {
    %c0 = arith.constant 0 : index
    %c0_0 = arith.constant 0 : index
    %0 = vector.load %arg6[%c0, %c0_0] : memref<1x640xf32, #tpu.memory_space<vmem>>, vector<1x256xf32>
    %c0_1 = arith.constant 0 : index
    %c256 = arith.constant 256 : index
    %1 = vector.load %arg6[%c0_1, %c256] : memref<1x640xf32, #tpu.memory_space<vmem>>, vector<1x128xf32>
    %c0_2 = arith.constant 0 : index
    %c384 = arith.constant 384 : index
    %2 = vector.load %arg6[%c0_2, %c384] : memref<1x640xf32, #tpu.memory_space<vmem>>, vector<1x128xf32>
    %c0_3 = arith.constant 0 : index
    %c512 = arith.constant 512 : index
    %3 = vector.load %arg6[%c0_3, %c512] : memref<1x640xf32, #tpu.memory_space<vmem>>, vector<1x128xf32>
    %c0_4 = arith.constant 0 : index
    %c0_5 = arith.constant 0 : index
    %4 = vector.load %arg1[%c0_4, %c0_5] : memref<16x8xf32, #tpu.memory_space<vmem>>, vector<16x8xf32>
    %c0_6 = arith.constant 0 : index
    %c0_7 = arith.constant 0 : index
    %5 = vector.load %arg2[%c0_6, %c0_7] : memref<8x256xf32, #tpu.memory_space<vmem>>, vector<8x256xf32>
    %cst = arith.constant dense<0.000000e+00> : vector<16x256xf32>
    %6 = tpu.matmul %4, %5, %cst {dimension_numbers = #tpu.dot_dimension_numbers<[1], [0], [0], [1], [0, 0, 1, 1], [], []>} : vector<16x8xf32>, vector<8x256xf32>, vector<16x256xf32> -> vector<16x256xf32>
    %7 = vector.broadcast %0 : vector<1x256xf32> to vector<16x256xf32>
    %8 = arith.addf %6, %7 : vector<16x256xf32>
    %cst_8 = arith.constant 0.000000e+00 : f32
    %9 = vector.broadcast %cst_8 : f32 to vector<16x256xf32>
    %10 = arith.maximumf %8, %9 : vector<16x256xf32>
    %c0_9 = arith.constant 0 : index
    %c0_10 = arith.constant 0 : index
    %11 = vector.load %arg3[%c0_9, %c0_10] : memref<256x128xf32, #tpu.memory_space<vmem>>, vector<256x128xf32>
    %cst_11 = arith.constant dense<0.000000e+00> : vector<16x128xf32>
    %12 = tpu.matmul %10, %11, %cst_11 {dimension_numbers = #tpu.dot_dimension_numbers<[1], [0], [0], [1], [0, 0, 1, 1], [], []>} : vector<16x256xf32>, vector<256x128xf32>, vector<16x128xf32> -> vector<16x128xf32>
    %13 = vector.broadcast %1 : vector<1x128xf32> to vector<16x128xf32>
    %14 = arith.addf %12, %13 : vector<16x128xf32>
    %cst_12 = arith.constant 0.000000e+00 : f32
    %15 = vector.broadcast %cst_12 : f32 to vector<16x128xf32>
    %16 = arith.maximumf %14, %15 : vector<16x128xf32>
    %c0_13 = arith.constant 0 : index
    %c0_14 = arith.constant 0 : index
    %17 = vector.load %arg4[%c0_13, %c0_14] : memref<128x128xf32, #tpu.memory_space<vmem>>, vector<128x128xf32>
    %cst_15 = arith.constant dense<0.000000e+00> : vector<16x128xf32>
    %18 = tpu.matmul %16, %17, %cst_15 {dimension_numbers = #tpu.dot_dimension_numbers<[1], [0], [0], [1], [0, 0, 1, 1], [], []>} : vector<16x128xf32>, vector<128x128xf32>, vector<16x128xf32> -> vector<16x128xf32>
    %19 = vector.broadcast %2 : vector<1x128xf32> to vector<16x128xf32>
    %20 = arith.addf %18, %19 : vector<16x128xf32>
    %cst_16 = arith.constant 0.000000e+00 : f32
    %21 = vector.broadcast %cst_16 : f32 to vector<16x128xf32>
    %22 = arith.maximumf %20, %21 : vector<16x128xf32>
    %c0_17 = arith.constant 0 : index
    %c0_18 = arith.constant 0 : index
    %23 = vector.load %arg5[%c0_17, %c0_18] : memref<1x128xf32, #tpu.memory_space<vmem>>, vector<1x128xf32>
    %24 = vector.broadcast %23 : vector<1x128xf32> to vector<16x128xf32>
    %25 = arith.mulf %22, %24 : vector<16x128xf32>
    %26 = vector.broadcast %3 : vector<1x128xf32> to vector<16x128xf32>
    %27 = arith.addf %25, %26 : vector<16x128xf32>
    %cst_19 = arith.constant dense<0.000000e+00> : vector<16xf32>
    %28 = vector.multi_reduction <add>, %27, %cst_19 [1] : vector<16x128xf32> to vector<16xf32>
    %29 = vector.shape_cast %28 : vector<16xf32> to vector<16x1xf32>
    %c0_20 = arith.constant 0 : index
    %c0_21 = arith.constant 0 : index
    %30 = vector.load %arg7[%c0_20, %c0_21] : memref<16x1xf32, #tpu.memory_space<vmem>>, vector<16x1xf32>
    tpu.vector_store %arg7[%c0_20, %c0_21], %29 {strides = array<i32>} : memref<16x1xf32, #tpu.memory_space<vmem>>, vector<16x1xf32>,
    return
  }
  func.func @transform_0(%arg0: i32) -> (i32, i32) {
    %c0_i32 = arith.constant 0 : i32
    %c0_i32_0 = arith.constant 0 : i32
    return %arg0, %c0_i32 : i32, i32
  }
  func.func @transform_1(%arg0: i32) -> (i32, i32) {
    %c0_i32 = arith.constant 0 : i32
    %c0_i32_0 = arith.constant 0 : i32
    %c0_i32_1 = arith.constant 0 : i32
    return %c0_i32, %c0_i32_0 : i32, i32
  }
  func.func @transform_2(%arg0: i32) -> (i32, i32) {
    %c0_i32 = arith.constant 0 : i32
    %c0_i32_0 = arith.constant 0 : i32
    %c0_i32_1 = arith.constant 0 : i32
    return %c0_i32, %c0_i32_0 : i32, i32
  }
  func.func @transform_3(%arg0: i32) -> (i32, i32) {
    %c0_i32 = arith.constant 0 : i32
    %c0_i32_0 = arith.constant 0 : i32
    %c0_i32_1 = arith.constant 0 : i32
    return %c0_i32, %c0_i32_0 : i32, i32
  }
  func.func @transform_4(%arg0: i32) -> (i32, i32) {
    %c0_i32 = arith.constant 0 : i32
    %c0_i32_0 = arith.constant 0 : i32
    %c0_i32_1 = arith.constant 0 : i32
    return %c0_i32, %c0_i32_0 : i32, i32
  }
  func.func @transform_5(%arg0: i32) -> (i32, i32) {
    %c0_i32 = arith.constant 0 : i32
    %c0_i32_0 = arith.constant 0 : i32
    %c0_i32_1 = arith.constant 0 : i32
    return %c0_i32, %c0_i32_0 : i32, i32
  }
  func.func @transform_6(%arg0: i32) -> (i32, i32) {
    %c0_i32 = arith.constant 0 : i32
    %c0_i32_0 = arith.constant 0 : i32
    return %arg0, %c0_i32 : i32, i32
  }
}

</mosaic_0001>

<llo_original>
// kernel: tpu_custom_call.1
$region0: #{tpu_custom_call.1}
  #allocation0 [shape = 'u32[]', space=smem, size = 0x4, offset = 0x4, fixed_abs, tag = 'smem constant byte address 0x4 - core index']
  #allocation1 [shape = 'u32[144,128]{1,0:T(1,128)}', space=vmem, size = 0x12000, scoped, tag = 'internal scratch']
  %s0 = inlined_call_operand.vmem [shape: f32[16,8], index: 0, kind: input, shape index: {}]
  %s1 = inlined_call_operand.vmem [shape: f32[8,256], index: 1, kind: input, shape index: {}]
  %s2 = inlined_call_operand.hbm [shape: f32[256,128], index: 2, kind: input, shape index: {}]
  %s3 = inlined_call_operand.hbm [shape: f32[128,128], index: 3, kind: input, shape index: {}]
  %s4 = inlined_call_operand.vmem [shape: f32[1,128], index: 4, kind: input, shape index: {}]
  %s5 = inlined_call_operand.vmem [shape: f32[1,640], index: 5, kind: input, shape index: {}]
  %s6 = inlined_call_operand.vmem [shape: f32[16,1], index: 6, kind: output, shape index: {}]
  %s7 = sld [smem:[#allocation0]]
  $region42: #{tpu_custom_call.1} parent=0
    _
  %s9 = ssub.s32 1, %s7
  %s10 = scalar_select 0, %s9, %s7
  $region1: #{tpu_custom_call.1} parent=0
    #allocation2 [shape = 'u8[131072]{0}', space=vmem, size = 0x20000, scoped, tag = 'input window, operand 2, single buffered']
    #allocation3 [shape = 's32[1]{0}', space=sflag, size = 0x4, scoped, tag = 'scoped memory for tpu_custom_call.1']
    #allocation4 [shape = 'u8[65536]{0}', space=vmem, size = 0x10000, scoped, tag = 'input window, operand 3, single buffered']
    #allocation5 [shape = 's32[1]{0}', space=sflag, size = 0x4, scoped, tag = 'scoped memory for tpu_custom_call.1']
    %11 = vsyncpa [#allocation3], 0
    %12 = vsyncpa [#allocation5], 0
    // Predicated region
    $region2: #{tpu_custom_call.1} parent=1 // pred_check
      _
    $region3: #{tpu_custom_call.1} parent=1 // pred_check_branch
      %14 = sbr.rel (0) target = $region5
    $region4: #{tpu_custom_call.1} parent=1 // pred_region
      _
    $region5: #{tpu_custom_call.1} parent=1 // pred_fallthru
      _
    // Predicated region
    $region6: #{tpu_custom_call.1} parent=1 // pred_check
      _
    $region7: #{tpu_custom_call.1} parent=1 // pred_check_branch
      %16 = sbr.rel (0) target = $region9
    $region8: #{tpu_custom_call.1} parent=1 // pred_region
      _
    $region9: #{tpu_custom_call.1} parent=1 // pred_fallthru
      _
    // Predicated region
    $region10: #{tpu_custom_call.1} parent=1 // pred_check
      _
    $region11: #{tpu_custom_call.1} parent=1 // pred_check_branch
      %18 = sbr.rel (0) target = $region13
    $region12: #{tpu_custom_call.1} parent=1 // pred_region
      %s20 = ssub.s32 4096, 4096
      %21 = vsyncadd [#allocation3], %s20
      %s22 = sshll.u32 [#allocation2], 4
      %s23 = int_to_ptr.vmem [resolvable:$true] %s22
      %28 = dma.hbm_to_vmem [thread:$0]  %s2, 4096, %s23, [#allocation3], 128, 128, 8
    $region13: #{tpu_custom_call.1} parent=1 // pred_fallthru
      _
    // Predicated region
    $region14: #{tpu_custom_call.1} parent=1 // pred_check
      _
    $region15: #{tpu_custom_call.1} parent=1 // pred_check_branch
      %30 = sbr.rel (0) target = $region17
    $region16: #{tpu_custom_call.1} parent=1 // pred_region
      %s32 = ssub.s32 2048, 2048
      %33 = vsyncadd [#allocation5], %s32
      %s34 = sshll.u32 [#allocation4], 4
      %s35 = int_to_ptr.vmem [resolvable:$true] %s34
      %40 = dma.hbm_to_vmem [thread:$0]  %s3, 2048, %s35, [#allocation5], 128, 128, 8
    $region17: #{tpu_custom_call.1} parent=1 // pred_fallthru
      _
    // Predicated region
    $region18: #{tpu_custom_call.1} parent=1 // pred_check
      _
    $region19: #{tpu_custom_call.1} parent=1 // pred_check_branch
      %42 = sbr.rel (0) target = $region21
    $region20: #{tpu_custom_call.1} parent=1 // pred_region
      _
    $region21: #{tpu_custom_call.1} parent=1 // pred_fallthru
      _
    // Predicated region
    $region22: #{tpu_custom_call.1} parent=1 // pred_check
      _
    $region23: #{tpu_custom_call.1} parent=1 // pred_check_branch
      %44 = sbr.rel (0) target = $region25
    $region24: #{tpu_custom_call.1} parent=1 // pred_region
      _
    $region25: #{tpu_custom_call.1} parent=1 // pred_fallthru
      _
    // Predicated region
    $region26: #{tpu_custom_call.1} parent=1 // pred_check
      _
    $region27: #{tpu_custom_call.1} parent=1 // pred_check_branch
      %46 = sbr.rel (0) target = $region29
    $region28: #{tpu_custom_call.1} parent=1 // pred_region
      %47 = dma.done [#allocation3], 4096
    $region29: #{tpu_custom_call.1} parent=1 // pred_fallthru
      _
    // Predicated region
    $region30: #{tpu_custom_call.1} parent=1 // pred_check
      _
    $region31: #{tpu_custom_call.1} parent=1 // pred_check_branch
      %49 = sbr.rel (0) target = $region33
    $region32: #{tpu_custom_call.1} parent=1 // pred_region
      %50 = dma.done [#allocation5], 2048
    $region33: #{tpu_custom_call.1} parent=1 // pred_fallthru
      _
    %v51 = vld [vmem:[%s5] sm:$0x3]
    %v52 = vld [vmem:[%s5 + $0x2] sm:$0x1]
    %v53 = vld [vmem:[%s5 + $0x3] sm:$0x1]
    %v54 = vld [vmem:[%s5 + $0x4] sm:$0x1]
    %v55 = vld [vmem:[%s0] sm:$0xff]
    %v56 = vld [vmem:[%s0 + $0x8] sm:$0xff]
    %v57 = vld [vmem:[%s1] sm:$0xff]
    %v58 = vld [vmem:[%s1 + $0x8] sm:$0xff]
    %v60 = vlaneseq
    %v61 = vshrl.u32 %v60, 7
    %v62 = vsub.s32 0, %v61
    %v63 = vrot.slane %v51, %v62
    %v64 = vlaneseq
    %v65 = vshrl.u32 %v64, 7
    %v66 = vsub.s32 1, %v65
    %v67 = vrot.slane %v51, %v66
    %vm70 = vcmask 64512
    %v72 = vsel %vm70, %v55, 0
    %v75 = vsel %vm70, %v56, 0
    %77 = vmatprep.subr.mxu0 0.0
    %78 = vmatpush1.msra.mxu0 0.0
    %79 = vmatprep.subr.mxu0 0.0
    %80 = vmatpush1.msra.mxu0 0.0
    %81 = vmatprep.subr.mxu0 0.0
    %82 = vmatpush1.msra.mxu0 0.0
    %83 = vmatprep.subr.mxu0 0.0
    %84 = vmatpush1.msra.mxu0 0.0
    %85 = vmatprep.subr.mxu0 0.0
    %86 = vmatpush1.msra.mxu0 0.0
    %87 = vmatprep.subr.mxu0 0.0
    %88 = vmatpush1.msra.mxu0 0.0
    %89 = vmatprep.subr.mxu0 0.0
    %90 = vmatpush1.msra.mxu0 0.0
    %91 = vmatprep.subr.mxu0 0.0
    %92 = vmatpush1.msra.mxu0 0.0
    %93 = vmatprep.subr.mxu0 0.0
    %94 = vmatpush1.msra.mxu0 0.0
    %95 = vmatprep.subr.mxu0 0.0
    %96 = vmatpush1.msra.mxu0 0.0
    %97 = vmatprep.subr.mxu0 0.0
    %98 = vmatpush1.msra.mxu0 0.0
    %99 = vmatprep.subr.mxu0 0.0
    %100 = vmatpush1.msra.mxu0 0.0
    %101 = vmatprep.subr.mxu0 0.0
    %102 = vmatpush1.msra.mxu0 0.0
    %103 = vmatprep.subr.mxu0 0.0
    %104 = vmatpush1.msra.mxu0 0.0
    %105 = vmatprep.subr.mxu0 0.0
    %106 = vmatpush1.msra.mxu0 0.0
    %107 = vmatprep.subr.mxu0 %v58
    %108 = vmatpush1.msra.mxu0 %v57
    %109 = vmatprep.subr.mxu0 0.0
    %110 = vmatpush2.msra.mxu0 0.0
    %111 = vmatprep.subr.mxu0 0.0
    %112 = vmatpush2.msra.mxu0 0.0
    %113 = vmatprep.subr.mxu0 0.0
    %114 = vmatpush2.msra.mxu0 0.0
    %115 = vmatprep.subr.mxu0 0.0
    %116 = vmatpush2.msra.mxu0 0.0
    %117 = vmatprep.subr.mxu0 0.0
    %118 = vmatpush2.msra.mxu0 0.0
    %119 = vmatprep.subr.mxu0 0.0
    %120 = vmatpush2.msra.mxu0 0.0
    %121 = vmatprep.subr.mxu0 0.0
    %122 = vmatpush2.msra.mxu0 0.0
    %123 = vmatprep.subr.mxu0 0.0
    %124 = vmatpush2.msra.mxu0 0.0
    %125 = vmatprep.subr.mxu0 0.0
    %126 = vmatpush2.msra.mxu0 0.0
    %127 = vmatprep.subr.mxu0 0.0
    %128 = vmatpush2.msra.mxu0 0.0
    %129 = vmatprep.subr.mxu0 0.0
    %130 = vmatpush2.msra.mxu0 0.0
    %131 = vmatprep.subr.mxu0 0.0
    %132 = vmatpush2.msra.mxu0 0.0
    %133 = vmatprep.subr.mxu0 0.0
    %134 = vmatpush2.msra.mxu0 0.0
    %135 = vmatprep.subr.mxu0 0.0
    %136 = vmatpush2.msra.mxu0 0.0
    %137 = vmatprep.subr.mxu0 0.0
    %138 = vmatpush2.msra.mxu0 0.0
    %139 = vmatprep.subr.mxu0 0.0
    %140 = vmatpush2.msra.mxu0 0.0
    %141 = vmatprep.mubr.f32.mxu0 0.0
    %142 = vmatmul.mubr.f32.gmra.mxu0 %v72
    %v143 = vpop.f32.mrf.mxu0
    %v144 = vadd.f32 %v63, %v143
    %v145 = vpop.f32.mrf.mxu0
    %v146 = vadd.f32 %v67, %v145
    %147 = vmatprep.mubr.f32.mxu0 0.0
    %148 = vmatmul.mubr.f32.gmra.mxu0 %v75
    %v149 = vpop.f32.mrf.mxu0
    %v150 = vadd.f32 %v63, %v149
    %v151 = vpop.f32.mrf.mxu0
    %v152 = vadd.f32 %v67, %v151
    %153 = vdwg.mxu0
    %v154 = vmax.f32 %v144, 0.0
    %v155 = vmax.f32 %v146, 0.0
    %v156 = vmax.f32 %v150, 0.0
    %v157 = vmax.f32 %v152, 0.0
    %v158 = vld [vmem:[#allocation2] sm:$0xff]
    %v159 = vld [vmem:[#allocation2 + $0x8] sm:$0xff]
    %v160 = vld [vmem:[#allocation2 + $0x10] sm:$0xff]
    %v161 = vld [vmem:[#allocation2 + $0x18] sm:$0xff]
    %v162 = vld [vmem:[#allocation2 + $0x20] sm:$0xff]
    %v163 = vld [vmem:[#allocation2 + $0x28] sm:$0xff]
    %v164 = vld [vmem:[#allocation2 + $0x30] sm:$0xff]
    %v165 = vld [vmem:[#allocation2 + $0x38] sm:$0xff]
    %v166 = vld [vmem:[#allocation2 + $0x40] sm:$0xff]
    %v167 = vld [vmem:[#allocation2 + $0x48] sm:$0xff]
    %v168 = vld [vmem:[#allocation2 + $0x50] sm:$0xff]
    %v169 = vld [vmem:[#allocation2 + $0x58] sm:$0xff]
    %v170 = vld [vmem:[#allocation2 + $0x60] sm:$0xff]
    %v171 = vld [vmem:[#allocation2 + $0x68] sm:$0xff]
    %v172 = vld [vmem:[#allocation2 + $0x70] sm:$0xff]
    %v173 = vld [vmem:[#allocation2 + $0x78] sm:$0xff]
    %v174 = vld [vmem:[#allocation2 + $0x80] sm:$0xff]
    %v175 = vld [vmem:[#allocation2 + $0x88] sm:$0xff]
    %v176 = vld [vmem:[#allocation2 + $0x90] sm:$0xff]
    %v177 = vld [vmem:[#allocation2 + $0x98] sm:$0xff]
    %v178 = vld [vmem:[#allocation2 + $0xa0] sm:$0xff]
    %v179 = vld [vmem:[#allocation2 + $0xa8] sm:$0xff]
    %v180 = vld [vmem:[#allocation2 + $0xb0] sm:$0xff]
    %v181 = vld [vmem:[#allocation2 + $0xb8] sm:$0xff]
    %v182 = vld [vmem:[#allocation2 + $0xc0] sm:$0xff]
    %v183 = vld [vmem:[#allocation2 + $0xc8] sm:$0xff]
    %v184 = vld [vmem:[#allocation2 + $0xd0] sm:$0xff]
    %v185 = vld [vmem:[#allocation2 + $0xd8] sm:$0xff]
    %v186 = vld [vmem:[#allocation2 + $0xe0] sm:$0xff]
    %v187 = vld [vmem:[#allocation2 + $0xe8] sm:$0xff]
    %v188 = vld [vmem:[#allocation2 + $0xf0] sm:$0xff]
    %v189 = vld [vmem:[#allocation2 + $0xf8] sm:$0xff]
    %v191 = vlaneseq
    %v192 = vshrl.u32 %v191, 7
    %v193 = vsub.s32 0, %v192
    %v194 = vrot.slane %v52, %v193
    %196 = vmatprep.subr.mxu0 0.0
    %197 = vmatpush1.msra.mxu0 %v173
    %198 = vmatprep.subr.mxu0 0.0
    %199 = vmatpush1.msra.mxu0 %v172
    %200 = vmatprep.subr.mxu0 0.0
    %201 = vmatpush1.msra.mxu0 %v171
    %202 = vmatprep.subr.mxu0 0.0
    %203 = vmatpush1.msra.mxu0 %v170
    %204 = vmatprep.subr.mxu0 0.0
    %205 = vmatpush1.msra.mxu0 %v169
    %206 = vmatprep.subr.mxu0 0.0
    %207 = vmatpush1.msra.mxu0 %v168
    %208 = vmatprep.subr.mxu0 0.0
    %209 = vmatpush1.msra.mxu0 %v167
    %210 = vmatprep.subr.mxu0 0.0
    %211 = vmatpush1.msra.mxu0 %v166
    %212 = vmatprep.subr.mxu0 0.0
    %213 = vmatpush1.msra.mxu0 %v165
    %214 = vmatprep.subr.mxu0 0.0
    %215 = vmatpush1.msra.mxu0 %v164
    %216 = vmatprep.subr.mxu0 0.0
    %217 = vmatpush1.msra.mxu0 %v163
    %218 = vmatprep.subr.mxu0 0.0
    %219 = vmatpush1.msra.mxu0 %v162
    %220 = vmatprep.subr.mxu0 0.0
    %221 = vmatpush1.msra.mxu0 %v161
    %222 = vmatprep.subr.mxu0 0.0
    %223 = vmatpush1.msra.mxu0 %v160
    %224 = vmatprep.subr.mxu0 0.0
    %225 = vmatpush1.msra.mxu0 %v159
    %226 = vmatprep.subr.mxu0 0.0
    %227 = vmatpush1.msra.mxu0 %v158
    %228 = vmatprep.subr.mxu0 0.0
    %229 = vmatpush2.msra.mxu0 %v189
    %230 = vmatprep.subr.mxu0 0.0
    %231 = vmatpush2.msra.mxu0 %v188
    %232 = vmatprep.subr.mxu0 0.0
    %233 = vmatpush2.msra.mxu0 %v187
    %234 = vmatprep.subr.mxu0 0.0
    %235 = vmatpush2.msra.mxu0 %v186
    %236 = vmatprep.subr.mxu0 0.0
    %237 = vmatpush2.msra.mxu0 %v185
    %238 = vmatprep.subr.mxu0 0.0
    %239 = vmatpush2.msra.mxu0 %v184
    %240 = vmatprep.subr.mxu0 0.0
    %241 = vmatpush2.msra.mxu0 %v183
    %242 = vmatprep.subr.mxu0 0.0
    %243 = vmatpush2.msra.mxu0 %v182
    %244 = vmatprep.subr.mxu0 0.0
    %245 = vmatpush2.msra.mxu0 %v181
    %246 = vmatprep.subr.mxu0 0.0
    %247 = vmatpush2.msra.mxu0 %v180
    %248 = vmatprep.subr.mxu0 0.0
    %249 = vmatpush2.msra.mxu0 %v179
    %250 = vmatprep.subr.mxu0 0.0
    %251 = vmatpush2.msra.mxu0 %v178
    %252 = vmatprep.subr.mxu0 0.0
    %253 = vmatpush2.msra.mxu0 %v177
    %254 = vmatprep.subr.mxu0 0.0
    %255 = vmatpush2.msra.mxu0 %v176
    %256 = vmatprep.subr.mxu0 0.0
    %257 = vmatpush2.msra.mxu0 %v175
    %258 = vmatprep.subr.mxu0 0.0
    %259 = vmatpush2.msra.mxu0 %v174
    %260 = vmatprep.mubr.f32.mxu0 %v155
    %261 = vmatmul.mubr.f32.gmra.mxu0 %v154
    %v262 = vpop.f32.mrf.mxu0
    %v263 = vadd.f32 %v194, %v262
    %v264 = vpop.f32.mrf.mxu0
    %265 = vmatprep.mubr.f32.mxu0 %v157
    %266 = vmatmul.mubr.f32.gmra.mxu0 %v156
    %v267 = vpop.f32.mrf.mxu0
    %v268 = vadd.f32 %v194, %v267
    %v269 = vpop.f32.mrf.mxu0
    %270 = vdwg.mxu0
    %v271 = vmax.f32 %v263, 0.0
    %v272 = vmax.f32 %v268, 0.0
    %v273 = vld [vmem:[#allocation4] sm:$0xff]
    %v274 = vld [vmem:[#allocation4 + $0x8] sm:$0xff]
    %v275 = vld [vmem:[#allocation4 + $0x10] sm:$0xff]
    %v276 = vld [vmem:[#allocation4 + $0x18] sm:$0xff]
    %v277 = vld [vmem:[#allocation4 + $0x20] sm:$0xff]
    %v278 = vld [vmem:[#allocation4 + $0x28] sm:$0xff]
    %v279 = vld [vmem:[#allocation4 + $0x30] sm:$0xff]
    %v280 = vld [vmem:[#allocation4 + $0x38] sm:$0xff]
    %v281 = vld [vmem:[#allocation4 + $0x40] sm:$0xff]
    %v282 = vld [vmem:[#allocation4 + $0x48] sm:$0xff]
    %v283 = vld [vmem:[#allocation4 + $0x50] sm:$0xff]
    %v284 = vld [vmem:[#allocation4 + $0x58] sm:$0xff]
    %v285 = vld [vmem:[#allocation4 + $0x60] sm:$0xff]
    %v286 = vld [vmem:[#allocation4 + $0x68] sm:$0xff]
    %v287 = vld [vmem:[#allocation4 + $0x70] sm:$0xff]
    %v288 = vld [vmem:[#allocation4 + $0x78] sm:$0xff]
    %v290 = vlaneseq
    %v291 = vshrl.u32 %v290, 7
    %v292 = vsub.s32 0, %v291
    %v293 = vrot.slane %v53, %v292
    %295 = vmatprep.subr.mxu0 0.0
    %296 = vmatpush1.msra.mxu0 %v288
    %297 = vmatprep.subr.mxu0 0.0
    %298 = vmatpush1.msra.mxu0 %v287
    %299 = vmatprep.subr.mxu0 0.0
    %300 = vmatpush1.msra.mxu0 %v286
    %301 = vmatprep.subr.mxu0 0.0
    %302 = vmatpush1.msra.mxu0 %v285
    %303 = vmatprep.subr.mxu0 0.0
    %304 = vmatpush1.msra.mxu0 %v284
    %305 = vmatprep.subr.mxu0 0.0
    %306 = vmatpush1.msra.mxu0 %v283
    %307 = vmatprep.subr.mxu0 0.0
    %308 = vmatpush1.msra.mxu0 %v282
    %309 = vmatprep.subr.mxu0 0.0
    %310 = vmatpush1.msra.mxu0 %v281
    %311 = vmatprep.subr.mxu0 0.0
    %312 = vmatpush1.msra.mxu0 %v280
    %313 = vmatprep.subr.mxu0 0.0
    %314 = vmatpush1.msra.mxu0 %v279
    %315 = vmatprep.subr.mxu0 0.0
    %316 = vmatpush1.msra.mxu0 %v278
    %317 = vmatprep.subr.mxu0 0.0
    %318 = vmatpush1.msra.mxu0 %v277
    %319 = vmatprep.subr.mxu0 0.0
    %320 = vmatpush1.msra.mxu0 %v276
    %321 = vmatprep.subr.mxu0 0.0
    %322 = vmatpush1.msra.mxu0 %v275
    %323 = vmatprep.subr.mxu0 0.0
    %324 = vmatpush1.msra.mxu0 %v274
    %325 = vmatprep.subr.mxu0 0.0
    %326 = vmatpush1.msra.mxu0 %v273
    %327 = vmatprep.subr.mxu0 0.0
    %328 = vmatpush2.msra.mxu0 0.0
    %329 = vmatprep.subr.mxu0 0.0
    %330 = vmatpush2.msra.mxu0 0.0
    %331 = vmatprep.subr.mxu0 0.0
    %332 = vmatpush2.msra.mxu0 0.0
    %333 = vmatprep.subr.mxu0 0.0
    %334 = vmatpush2.msra.mxu0 0.0
    %335 = vmatprep.subr.mxu0 0.0
    %336 = vmatpush2.msra.mxu0 0.0
    %337 = vmatprep.subr.mxu0 0.0
    %338 = vmatpush2.msra.mxu0 0.0
    %339 = vmatprep.subr.mxu0 0.0
    %340 = vmatpush2.msra.mxu0 0.0
    %341 = vmatprep.subr.mxu0 0.0
    %342 = vmatpush2.msra.mxu0 0.0
    %343 = vmatprep.subr.mxu0 0.0
    %344 = vmatpush2.msra.mxu0 0.0
    %345 = vmatprep.subr.mxu0 0.0
    %346 = vmatpush2.msra.mxu0 0.0
    %347 = vmatprep.subr.mxu0 0.0
    %348 = vmatpush2.msra.mxu0 0.0
    %349 = vmatprep.subr.mxu0 0.0
    %350 = vmatpush2.msra.mxu0 0.0
    %351 = vmatprep.subr.mxu0 0.0
    %352 = vmatpush2.msra.mxu0 0.0
    %353 = vmatprep.subr.mxu0 0.0
    %354 = vmatpush2.msra.mxu0 0.0
    %355 = vmatprep.subr.mxu0 0.0
    %356 = vmatpush2.msra.mxu0 0.0
    %357 = vmatprep.subr.mxu0 0.0
    %358 = vmatpush2.msra.mxu0 0.0
    %359 = vmatprep.mubr.f32.mxu0 0.0
    %360 = vmatmul.mubr.f32.gmra.mxu0 %v271
    %v361 = vpop.f32.mrf.mxu0
    %v362 = vadd.f32 %v293, %v361
    %v363 = vpop.f32.mrf.mxu0
    %364 = vmatprep.mubr.f32.mxu0 0.0
    %365 = vmatmul.mubr.f32.gmra.mxu0 %v272
    %v366 = vpop.f32.mrf.mxu0
    %v367 = vadd.f32 %v293, %v366
    %v368 = vpop.f32.mrf.mxu0
    %369 = vdwg.mxu0
    %v370 = vmax.f32 %v362, 0.0
    %v371 = vmax.f32 %v367, 0.0
    %v372 = vld [vmem:[%s4] sm:$0x1]
    %v374 = vlaneseq
    %v375 = vshrl.u32 %v374, 7
    %v376 = vsub.s32 0, %v375
    %v377 = vrot.slane %v372, %v376
    %v379 = vmul.f32 %v370, %v377
    %v380 = vmul.f32 %v371, %v377
    %v382 = vlaneseq
    %v383 = vshrl.u32 %v382, 7
    %v384 = vsub.s32 0, %v383
    %v385 = vrot.slane %v54, %v384
    %v387 = vadd.f32 %v379, %v385
    %v388 = vadd.f32 %v380, %v385
    %389 = vadd.xlane.f32.xlu0 %v387
    %v390 = vpop.xlane.xlu0 %389
    %391 = vadd.xlane.f32.xlu0 %v388
    %v392 = vpop.xlane.xlu0 %391
    %vm393 = vcmask 7168
    %394 = vst.msk [vmem:[%s6] sm:$0xff] %vm393, %v390
    %395 = vst.msk [vmem:[%s6 + $0x8] sm:$0xff] %vm393, %v392
    // Predicated region
    $region34: #{tpu_custom_call.1} parent=1 // pred_check
      _
    $region35: #{tpu_custom_call.1} parent=1 // pred_check_branch
      %397 = sbr.rel (0) target = $region37
    $region36: #{tpu_custom_call.1} parent=1 // pred_region
      _
    $region37: #{tpu_custom_call.1} parent=1 // pred_fallthru
      _
    // Predicated region
    $region38: #{tpu_custom_call.1} parent=1 // pred_check
      _
    $region39: #{tpu_custom_call.1} parent=1 // pred_check_branch
      %399 = sbr.rel (0) target = $region41
    $region40: #{tpu_custom_call.1} parent=1 // pred_region
      _
    $region41: #{tpu_custom_call.1} parent=1 // pred_fallthru
      _
    %400 = vsyncpa [#allocation3], 1
    %401 = vsyncpa [#allocation5], 1

</llo_original>
